<compile_context>
chip_gen: v7x
topology: tpu7x:2x2x1
jax: 0.10.0
libtpu: 0.0.40
codegen_flags: <defaults>
</compile_context>

<pallas_src>
import functools
import math

import jax
import jax.numpy as jnp
from jax.experimental import pallas as pl
from jax.experimental.pallas import tpu as pltpu

BN_EPS = 1e-5
BN_SCALE = 1.0 / math.sqrt(1.0 + BN_EPS)


def _batch_blockdiag(m, batch):
    """kron(I_batch, m): per-batch right-multiplication in the (frames, B*C) folded layout."""
    return jnp.kron(jnp.eye(batch, dtype=m.dtype), m)


# --------------------------------------------------------------------------
# Generic M-tiled matmul (+ bias, + optional ReLU), bf16 operands / f32 accum
# --------------------------------------------------------------------------

def _mm_kernel(a_ref, b_ref, bias_ref, o_ref, *, activation):
    acc = jnp.dot(a_ref[...], b_ref[...], preferred_element_type=jnp.float32)
    acc = acc + bias_ref[...]                       # (1, N) broadcast in-kernel
    if activation == "relu":
        acc = jnp.maximum(acc, 0.0)
    o_ref[...] = acc.astype(o_ref.dtype)


def pallas_matmul(a, b, bias=None, activation=None, *, tm=512,
                  compute_dtype=jnp.bfloat16):
    """o = act(a @ b + bias).  a:(M,K), b:(K,N), bias:(N,) or None."""
    M, K = a.shape
    K2, N = b.shape
    assert K == K2
    if bias is None:
        bias = jnp.zeros((N,), jnp.float32)
    bias2 = bias.reshape(1, N).astype(jnp.float32)
    a = a.astype(compute_dtype)
    b = b.astype(compute_dtype)
    tm = min(tm, M)
    return pl.pallas_call(
        functools.partial(_mm_kernel, activation=activation),
        out_shape=jax.ShapeDtypeStruct((M, N), jnp.float32),
        grid=(pl.cdiv(M, tm),),
        in_specs=[
            pl.BlockSpec((tm, K), lambda i: (i, 0)),
            pl.BlockSpec((K, N), lambda i: (0, 0)),
            pl.BlockSpec((1, N), lambda i: (0, 0)),
        ],
        out_specs=pl.BlockSpec((tm, N), lambda i: (i, 0)),
        compiler_params=pltpu.CompilerParams(dimension_semantics=("parallel",)),
    )(a, b, bias2)


# --------------------------------------------------------------------------
# Fully fused bidirectional LSTM layer:
#   gate projection + forward & reverse recurrences in ONE kernel invocation.
# --------------------------------------------------------------------------

def _sigmoid(x):
    # numerically stable sigmoid via tanh (maps to the EUP slot)
    return 0.5 * (jnp.tanh(0.5 * x) + 1.0)


def _bilstm_kernel(x_ref, wih_ref, bias_ref, whh_ref, out_ref,
                   xg_scr, h_scr, c_scr, *, hidden, seq_len, batch):
    H, B, T = hidden, batch, seq_len

    # 1) Fused gate projection for ALL timesteps and BOTH directions at once:
    #    (T*B, Fin) @ (Fin, 8H) + bias, kept in VMEM (never hits HBM).
    xg_scr[...] = (jnp.dot(x_ref[...], wih_ref[...],
                           preferred_element_type=jnp.float32) + bias_ref[...])

    h_scr[...] = jnp.zeros_like(h_scr)   # [h_fwd | h_rev]  (B, 2H)
    c_scr[...] = jnp.zeros_like(c_scr)   # [c_fwd | c_rev]

    # 2) Time recurrence in-kernel (no per-timestep grid / DMA overhead).
    #    One block-diagonal (B,2H)@(2H,8H) MXU call covers both directions.
    @pl.loop(0, T)
    def _(t):
        xg_f = xg_scr[pl.ds(t * B, B), 0:4 * H]                 # fwd gates @ time t
        xg_r = xg_scr[pl.ds((T - 1 - t) * B, B), 4 * H:8 * H]   # rev gates @ time T-1-t
        rec = jnp.dot(h_scr[...].astype(jnp.bfloat16), whh_ref[...],
                      preferred_element_type=jnp.float32)        # (B, 8H)
        g_f = xg_f + rec[:, 0:4 * H]
        g_r = xg_r + rec[:, 4 * H:8 * H]

        def gates(g):
            i = _sigmoid(g[:, 0:H])
            f = _sigmoid(g[:, H:2 * H])
            u = jnp.tanh(g[:, 2 * H:3 * H])
            o = _sigmoid(g[:, 3 * H:4 * H])
            return i, f, u, o

        i_f, f_f, u_f, o_f = gates(g_f)
        i_r, f_r, u_r, o_r = gates(g_r)
        c_f = f_f * c_scr[:, 0:H] + i_f * u_f
        c_r = f_r * c_scr[:, H:2 * H] + i_r * u_r
        h_f = o_f * jnp.tanh(c_f)
        h_r = o_r * jnp.tanh(c_r)
        c_scr[:, 0:H] = c_f
        c_scr[:, H:2 * H] = c_r
        h_scr[:, 0:H] = h_f
        h_scr[:, H:2 * H] = h_r
        # Output block is fully VMEM-resident; single HBM writeback at the end.
        out_ref[t, :, 0:H] = h_f
        out_ref[T - 1 - t, :, H:2 * H] = h_r


def bilstm_layer(x_flat, p, hidden, seq_len, batch):
    """One fused bidirectional LSTM layer.  x_flat: (T*B, F_in) -> (T, B, 2H)."""
    TB, f_in = x_flat.shape
    H = hidden
    return pl.pallas_call(
        functools.partial(_bilstm_kernel, hidden=H, seq_len=seq_len, batch=batch),
        out_shape=jax.ShapeDtypeStruct((seq_len, batch, 2 * H), jnp.float32),
        grid=(1,),
        in_specs=[
            pl.BlockSpec((TB, f_in), lambda i: (0, 0)),        # inputs, all timesteps
            pl.BlockSpec((f_in, 8 * H), lambda i: (0, 0)),     # W_ih fwd||rev (bf16)
            pl.BlockSpec((1, 8 * H), lambda i: (0, 0)),        # b_ih + b_hh, fwd||rev
            pl.BlockSpec((2 * H, 8 * H), lambda i: (0, 0)),    # blockdiag(W_hh_f, W_hh_r)
        ],
        out_specs=pl.BlockSpec((seq_len, batch, 2 * H), lambda i: (0, 0, 0)),
        scratch_shapes=[pltpu.VMEM((TB, 8 * H), jnp.float32),      # xg (all gates)
                        pltpu.VMEM((batch, 2 * H), jnp.float32),   # h  [fwd|rev]
                        pltpu.VMEM((batch, 2 * H), jnp.float32)],  # c  [fwd|rev]
        compiler_params=pltpu.CompilerParams(
            dimension_semantics=("arbitrary",),
            vmem_limit_bytes=48 * 1024 * 1024),
    )(x_flat.astype(jnp.bfloat16), p["w_ih_cat_t"], p["b_cat"], p["w_hh_cat"])


def bilstm_core(x_flat, p, hidden, seq_len, batch):
    """fc1 -> relu -> 2-layer fused biLSTM.  x_flat: (T*B, F) -> (T, B, 2H)."""
    h = pallas_matmul(x_flat, p["fc1_w_t"], bias=p["fc1_b"], activation="relu")
    out = None
    for lp in p["lstm"]:
        out = bilstm_layer(h, lp, hidden, seq_len, batch)
        h = out.reshape(seq_len * batch, 2 * hidden)
    return out


# --------------------------------------------------------------------------
# GraphConvolution (spec module) — single grid step, batch folded into lanes
# --------------------------------------------------------------------------

def _graph_conv_kernel(x_ref, w_ref, a_ref, b_ref, o_ref):
    # folded layout: x is (f, B*n); out[:, b*n:(b+1)*n] = weight @ x_b @ att_k + bias
    y = jnp.dot(x_ref[...], a_ref[...], preferred_element_type=jnp.float32)
    z = jnp.dot(w_ref[...], y.astype(x_ref.dtype),
                preferred_element_type=jnp.float32) + b_ref[...]
    o_ref[...] = z.astype(o_ref.dtype)


def graph_convolution(x, weight, att, bias, dim=3, compute_dtype=jnp.bfloat16):
    """Exact GraphConvolution.forward (x: (b, f, node_n))."""
    b, f, n = x.shape
    # x.view(b,f,node,d).transpose(2,3) @ att  ==  x_flat @ kron(att, I_d)
    att_k = jnp.kron(att.astype(jnp.float32), jnp.eye(dim, dtype=jnp.float32))
    a_fold = _batch_blockdiag(att_k, b)                                   # (b*n, b*n)
    x_fold = jnp.transpose(x, (1, 0, 2)).reshape(f, b * n)                # (f, b*n)
    bias_fold = jnp.tile(bias, b).reshape(1, b * n).astype(jnp.float32)
    out_fold = pl.pallas_call(
        _graph_conv_kernel,
        out_shape=jax.ShapeDtypeStruct((f, b * n), jnp.float32),
        grid=(1,),
        in_specs=[
            pl.BlockSpec((f, b * n), lambda i: (0, 0)),
            pl.BlockSpec((f, f), lambda i: (0, 0)),
            pl.BlockSpec((b * n, b * n), lambda i: (0, 0)),
            pl.BlockSpec((1, b * n), lambda i: (0, 0)),
        ],
        out_specs=pl.BlockSpec((f, b * n), lambda i: (0, 0)),
        compiler_params=pltpu.CompilerParams(dimension_semantics=("arbitrary",)),
    )(x_fold.astype(compute_dtype), weight.astype(compute_dtype),
      a_fold.astype(compute_dtype), bias_fold)
    return out_fold.reshape(f, b, n).transpose(1, 0, 2)


# --------------------------------------------------------------------------
# Fused fc2 + GC_Block kernel, and fused Up-block kernel (batch folded in lanes)
# --------------------------------------------------------------------------

def _fc2_gc_block_kernel(y_ref, fw_ref, fb_ref, w1_ref, a1_ref, b1_ref,
                         w2_ref, a2_ref, b2_ref, o_ref):
    # All activations laid out (frames, B*channels); per-batch right-multiplications
    # use kron(I_B, W) block-diagonal weights -> plain 2D matmuls, no reshapes.
    x = jnp.dot(y_ref[...], fw_ref[...],
                preferred_element_type=jnp.float32) + fb_ref[...]          # fc2
    t1 = jnp.dot(x.astype(jnp.bfloat16), a1_ref[...],
                 preferred_element_type=jnp.float32)                       # gc1 att
    t1 = jnp.dot(w1_ref[...], t1.astype(jnp.bfloat16),
                 preferred_element_type=jnp.float32) + b1_ref[...]         # gc1 weight
    t1 = jnp.maximum(t1 * BN_SCALE, 0.0)                                   # bn + relu
    t2 = jnp.dot(t1.astype(jnp.bfloat16), a2_ref[...],
                 preferred_element_type=jnp.float32)                       # gc2 att
    t2 = jnp.dot(w2_ref[...], t2.astype(jnp.bfloat16),
                 preferred_element_type=jnp.float32) + b2_ref[...]         # gc2 weight
    t2 = jnp.maximum(t2 * BN_SCALE, 0.0)                                   # bn + relu
    o_ref[...] = (t2 + x).astype(o_ref.dtype)                              # residual


def fc2_gc_block(y_fold, rnn_p, gc_p, batch):
    """BiLSTM fc2 projection + GC_Block, fused.  y_fold: (F, B*2H) -> (F, B*node_n)."""
    F, BD = y_fold.shape
    n = gc_p["gc1"]["bias"].shape[0]
    Bn = batch * n
    fw = _batch_blockdiag(rnn_p["fc2_w_t"], batch).astype(jnp.bfloat16)
    fb = jnp.tile(rnn_p["fc2_b"], batch).reshape(1, Bn).astype(jnp.float32)
    w1 = gc_p["gc1"]["weight"].astype(jnp.bfloat16)
    a1 = _batch_blockdiag(gc_p["gc1"]["att_k"], batch).astype(jnp.bfloat16)
    b1 = jnp.tile(gc_p["gc1"]["bias"], batch).reshape(1, Bn).astype(jnp.float32)
    w2 = gc_p["gc2"]["weight"].astype(jnp.bfloat16)
    a2 = _batch_blockdiag(gc_p["gc2"]["att_k"], batch).astype(jnp.bfloat16)
    b2 = jnp.tile(gc_p["gc2"]["bias"], batch).reshape(1, Bn).astype(jnp.float32)
    return pl.pallas_call(
        _fc2_gc_block_kernel,
        out_shape=jax.ShapeDtypeStruct((F, Bn), jnp.float32),
        grid=(1,),
        in_specs=[
            pl.BlockSpec((F, BD), lambda i: (0, 0)),
            pl.BlockSpec((BD, Bn), lambda i: (0, 0)),
            pl.BlockSpec((1, Bn), lambda i: (0, 0)),
            pl.BlockSpec((F, F), lambda i: (0, 0)),
            pl.BlockSpec((Bn, Bn), lambda i: (0, 0)),
            pl.BlockSpec((1, Bn), lambda i: (0, 0)),
            pl.BlockSpec((F, F), lambda i: (0, 0)),
            pl.BlockSpec((Bn, Bn), lambda i: (0, 0)),
            pl.BlockSpec((1, Bn), lambda i: (0, 0)),
        ],
        out_specs=pl.BlockSpec((F, Bn), lambda i: (0, 0)),
        compiler_params=pltpu.CompilerParams(dimension_semantics=("arbitrary",)),
    )(y_fold.astype(jnp.bfloat16), fw, fb, w1, a1, b1, w2, a2, b2)


def _up_block_kernel(x_ref, m_ref, mb_ref, w_ref, a_ref, b_ref, o_ref):
    x = x_ref[...]                                                          # (F, B*C)
    y = (x * BN_SCALE).astype(jnp.bfloat16)                                 # bn1 (eval)
    # per-batch  [y_b | y_b @ W_up + b_up]  via  y @ kron(I_B, [I | W_up]) + bias
    out = jnp.dot(y, m_ref[...], preferred_element_type=jnp.float32) + mb_ref[...]
    t = jnp.dot(out.astype(jnp.bfloat16), a_ref[...],
                preferred_element_type=jnp.float32)                         # graph conv (att)
    t = jnp.dot(w_ref[...], t.astype(jnp.bfloat16),
                preferred_element_type=jnp.float32) + b_ref[...]            # graph conv (weight)
    t = jnp.maximum(t * BN_SCALE, 0.0)                                      # bn2 + relu
    o_ref[...] = (t + out).astype(o_ref.dtype)                              # residual


def up_block(x_fold, p, batch):
    """Fused Up block.  x_fold: (F, B*C) -> (F, B*(C+3))."""
    F, BC = x_fold.shape
    C = BC // batch
    Cout = C + 3
    BCout = batch * Cout
    m1 = jnp.concatenate([jnp.eye(C, dtype=jnp.float32), p["up_w_t"]], axis=1)
    m = _batch_blockdiag(m1, batch).astype(jnp.bfloat16)                    # (B*C, B*Cout)
    mb1 = jnp.concatenate([jnp.zeros((C,), jnp.float32), p["up_b"]])
    mb = jnp.tile(mb1, batch).reshape(1, BCout).astype(jnp.float32)
    w = p["gL"]["weight"].astype(jnp.bfloat16)
    a = _batch_blockdiag(p["gL"]["att_k"], batch).astype(jnp.bfloat16)
    bb = jnp.tile(p["gL"]["bias"], batch).reshape(1, BCout).astype(jnp.float32)
    return pl.pallas_call(
        _up_block_kernel,
        out_shape=jax.ShapeDtypeStruct((F, BCout), jnp.float32),
        grid=(1,),
        in_specs=[
            pl.BlockSpec((F, BC), lambda i: (0, 0)),
            pl.BlockSpec((BC, BCout), lambda i: (0, 0)),
            pl.BlockSpec((1, BCout), lambda i: (0, 0)),
            pl.BlockSpec((F, F), lambda i: (0, 0)),
            pl.BlockSpec((BCout, BCout), lambda i: (0, 0)),
            pl.BlockSpec((1, BCout), lambda i: (0, 0)),
        ],
        out_specs=pl.BlockSpec((F, BCout), lambda i: (0, 0)),
        compiler_params=pltpu.CompilerParams(dimension_semantics=("arbitrary",)),
    )(x_fold, m, mb, w, a, bb)


# ------------------------------- model glue --------------------------------

def predict_imu_forward(ori, acc, params):
    B, T = ori.shape[0], ori.shape[1]
    enc = jnp.concatenate([ori.reshape(B, T, -1), acc.reshape(B, T, -1)], axis=2)  # (B,T,72)
    enc_tb = enc.transpose(1, 0, 2)                                                # (T,B,72)

    lstm1 = bilstm_core(enc_tb.reshape(T * B, -1), params["rnn_pos"], 256, T, B)   # (T,B,512)
    # folded layout: (T, B, C) row-major == (T, B*C)
    y = fc2_gc_block(lstm1.reshape(T, B * 512), params["rnn_pos"],
                     params["gcn1"], B)                                            # (T, B*18)

    for up_p in params["progressive"]:
        y = up_block(y, up_p, B)                                                   # -> (T, B*30)

    enc2 = jnp.concatenate([y.reshape(T, B, -1), enc_tb], axis=2)                  # (T,B,102)
    lstm2 = bilstm_core(enc2.reshape(T * B, -1), params["all_position"], 128, T, B)
    out = fc2_gc_block(lstm2.reshape(T, B * 256), params["all_position"],
                       params["gcn2"], B)                                          # (T, B*72)
    out = out.reshape(T, B, 72).transpose(1, 0, 2)                                 # (B,T,72)
    return out.reshape(B, T, 24, 3)


# ----------------------------- parameter init ------------------------------

def _xavier_normal_t(key, fan_in, fan_out):
    std = math.sqrt(2.0 / (fan_in + fan_out))
    return jax.random.normal(key, (fan_in, fan_out), jnp.float32) * std


def _linear_params(key, fan_in, fan_out):
    return {"w_t": _xavier_normal_t(key, fan_in, fan_out),
            "b": jnp.full((fan_out,), 0.1, jnp.float32)}


def _lstm_dir_params(key, in_size, hidden):
    k = 1.0 / math.sqrt(hidden)
    k1, k2, k3, k4 = jax.random.split(key, 4)
    return {
        "w_ih_t": jax.random.uniform(k1, (in_size, 4 * hidden), jnp.float32, -k, k),
        "w_hh_t": jax.random.uniform(k2, (hidden, 4 * hidden), jnp.float32, -k, k),
        "b": (jax.random.uniform(k3, (4 * hidden,), jnp.float32, -k, k)
              + jax.random.uniform(k4, (4 * hidden,), jnp.float32, -k, k)),
    }


def _bilstm_layer_params(key, in_size, hidden):
    kf, kr = jax.random.split(key)
    pf = _lstm_dir_params(kf, in_size, hidden)
    pr = _lstm_dir_params(kr, in_size, hidden)
    # block-diagonal recurrent weight: [h_f | h_r] @ W -> [gates_f | gates_r]
    w_hh_cat = jnp.zeros((2 * hidden, 8 * hidden), jnp.float32)
    w_hh_cat = w_hh_cat.at[:hidden, :4 * hidden].set(pf["w_hh_t"])
    w_hh_cat = w_hh_cat.at[hidden:, 4 * hidden:].set(pr["w_hh_t"])
    return {
        "w_ih_cat_t": jnp.concatenate([pf["w_ih_t"], pr["w_ih_t"]],
                                      axis=1).astype(jnp.bfloat16),           # (in, 8H)
        "b_cat": jnp.concatenate([pf["b"], pr["b"]]).reshape(1, 8 * hidden),  # (1, 8H)
        "w_hh_cat": w_hh_cat.astype(jnp.bfloat16),                            # (2H, 8H)
    }


def _bilstm_params(key, in_size, out_size, hidden, num_layers=2):
    keys = jax.random.split(key, 2 + num_layers)
    fc1 = _linear_params(keys[0], in_size, hidden)
    fc2 = _linear_params(keys[1], 2 * hidden, out_size)
    layers = []
    for l in range(num_layers):
        in_l = hidden if l == 0 else 2 * hidden
        layers.append(_bilstm_layer_params(keys[2 + l], in_l, hidden))
    return {"fc1_w_t": fc1["w_t"], "fc1_b": fc1["b"],
            "fc2_w_t": fc2["w_t"], "fc2_b": fc2["b"], "lstm": layers}


def _gconv_params(key, frames, node_n, adj, dim=3):
    node = node_n // dim
    stdv = 1.0 / math.sqrt(node)
    k1, k2, k3 = jax.random.split(key, 3)
    weight = jax.random.uniform(k1, (frames, frames), jnp.float32, -stdv, stdv)
    q = jax.random.uniform(k2, (node, node), jnp.float32, 0.01, 0.24)
    att = adj * adj + q                       # Ap * M + Q, with Ap = M = adj
    # x.view(b,f,node,d).transpose(2,3) @ att  ==  x_flat @ kron(att, I_d)
    att_k = jnp.kron(att, jnp.eye(dim, dtype=jnp.float32))
    bias = jax.random.uniform(k3, (node_n,), jnp.float32, -stdv, stdv)
    return {"weight": weight, "att_k": att_k, "bias": bias}


def init_params(key, frames, input_size=72, mid_size=18, output_size=72):
    node_sizes = [6, 6, 7, 7, 8, 8, 9, 9, 10, 24]
    keys = jax.random.split(key, 32)
    ki = iter(keys)
    adjs = [jax.random.uniform(next(ki), (n, n), jnp.float32, 0.0, 1.0)
            for n in node_sizes]

    params = {}
    params["rnn_pos"] = _bilstm_params(next(ki), input_size, mid_size, 256)
    params["gcn1"] = {"gc1": _gconv_params(next(ki), frames, mid_size, adjs[0]),
                      "gc2": _gconv_params(next(ki), frames, mid_size, adjs[0])}
    prog = []
    up_cfg = [(mid_size, 21, adjs[2]), (21, 24, adjs[4]),
              (24, 27, adjs[6]), (27, 30, adjs[8])]
    for (cin, cout, adj) in up_cfg:
        kup, kgl = jax.random.split(next(ki))
        lin = _linear_params(kup, cin, 3)
        prog.append({"up_w_t": lin["w_t"], "up_b": lin["b"],
                     "gL": _gconv_params(kgl, frames, cout, adj)})
    params["progressive"] = prog
    params["all_position"] = _bilstm_params(next(ki), 30 + input_size, output_size, 128)
    params["gcn2"] = {"gc1": _gconv_params(next(ki), frames, output_size, adjs[-1]),
                      "gc2": _gconv_params(next(ki), frames, output_size, adjs[-1])}
    return params


# ----------------------------------- main -----------------------------------

def _graph_conv_reference(x, weight, att, bias, dim=3):
    """Pure-JAX reference of the PyTorch GraphConvolution.forward."""
    b, f, n = x.shape
    node = n // dim
    hi = jax.lax.Precision.HIGHEST
    x4 = x.reshape(b, f, node, dim).transpose(0, 1, 3, 2)
    y = jnp.matmul(x4, att, precision=hi).transpose(0, 1, 3, 2).reshape(b, f, n)
    return jnp.einsum("ij,bjn->bin", weight, y, precision=hi) + bias


if __name__ == "__main__":
    key = jax.random.PRNGKey(0)
    kx, kadj, kw, kq, kb, krest = jax.random.split(key, 6)

    # ---- standalone GraphConvolution kernel checked against the spec math ----
    b0, frames0, node_n0, dim0 = 2, 8, 48, 3
    node0 = node_n0 // dim0
    x0 = jax.random.normal(kx, (b0, frames0, node_n0), jnp.float32)
    adj0 = jax.random.uniform(kadj, (node0, node0), jnp.float32, 0.0, 1.0)
    stdv0 = 1.0 / math.sqrt(node0)
    w0 = jax.random.uniform(kw, (frames0, frames0), jnp.float32, -stdv0, stdv0)
    q0 = jax.random.uniform(kq, (node0, node0), jnp.float32, 0.01, 0.24)
    att0 = adj0 * adj0 + q0                     # Ap * M + Q with Ap = M = adj
    bias0 = jax.random.uniform(kb, (node_n0,), jnp.float32, -stdv0, stdv0)

    gc_ref = _graph_conv_reference(x0, w0, att0, bias0, dim0)
    # default (bf16 operands, f32 accumulation) path
    gc_out = jax.block_until_ready(graph_convolution(x0, w0, att0, bias0, dim0))
    assert gc_out.shape == (b0, frames0, node_n0), gc_out.shape
    assert jnp.allclose(gc_out, gc_ref, rtol=2e-2, atol=2e-2), \
        float(jnp.max(jnp.abs(gc_out - gc_ref)))
    # strict f32 path
    gc_out32 = jax.block_until_ready(
        graph_convolution(x0, w0, att0, bias0, dim0, compute_dtype=jnp.float32))
    assert jnp.allclose(gc_out32, gc_ref, rtol=1e-2, atol=1e-2), \
        float(jnp.max(jnp.abs(gc_out32 - gc_ref)))

    # ---- full Predict_imu forward (GraphConvolution inside its model) ----
    B, T = 2, 8                      # batch, frames
    input_size, mid_size, output_size = 72, 18, 72
    k_ori, k_acc, k_params = jax.random.split(krest, 3)
    ori = jax.random.normal(k_ori, (B, T, 6, 3, 3), jnp.float32)
    acc = jax.random.normal(k_acc, (B, T, 6, 3), jnp.float32)
    params = init_params(k_params, T, input_size, mid_size, output_size)

    fwd = jax.jit(lambda o, a: predict_imu_forward(o, a, params))
    out = jax.block_until_ready(fwd(ori, acc))
    assert out.shape == (B, T, 24, 3), out.shape
    assert jnp.all(jnp.isfinite(out))
    print("KERNEL_OK")
</pallas_src>

<mosaic_0001>
module attributes {stable_mosaic.version = 11 : i64} {
  func.func @_graph_conv_kernel(%arg0: i32, %arg1: memref<8x96xbf16, #tpu.memory_space<vmem>>, %arg2: memref<8x8xbf16, #tpu.memory_space<vmem>>, %arg3: memref<96x96xbf16, #tpu.memory_space<vmem>>, %arg4: memref<1x96xf32, #tpu.memory_space<vmem>>, %arg5: memref<8x96xf32, #tpu.memory_space<vmem>>) attributes {dimension_semantics = [#tpu.dimension_semantics<arbitrary>], iteration_bounds = array<i64: 1>, scalar_prefetch = 0 : i64, scratch_operands = 0 : i64, tpu.core_type = #tpu.core_type<tc>, window_params = [{pipeline_mode = #tpu.pipeline_mode<synchronous>, transform_indices = @transform_0, window_bounds = array<i64: 8, 96>}, {pipeline_mode = #tpu.pipeline_mode<synchronous>, transform_indices = @transform_1, window_bounds = array<i64: 8, 8>}, {pipeline_mode = #tpu.pipeline_mode<synchronous>, transform_indices = @transform_2, window_bounds = array<i64: 96, 96>}, {pipeline_mode = #tpu.pipeline_mode<synchronous>, transform_indices = @transform_3, window_bounds = array<i64: 1, 96>}, {pipeline_mode = #tpu.pipeline_mode<synchronous>, transform_indices = @transform_4, window_bounds = array<i64: 8, 96>}]} {
    %c0 = arith.constant 0 : index
    %c0_0 = arith.constant 0 : index
    %0 = vector.load %arg1[%c0, %c0_0] : memref<8x96xbf16, #tpu.memory_space<vmem>>, vector<8x96xbf16>
    %c0_1 = arith.constant 0 : index
    %c0_2 = arith.constant 0 : index
    %1 = vector.load %arg3[%c0_1, %c0_2] : memref<96x96xbf16, #tpu.memory_space<vmem>>, vector<96x96xbf16>
    %cst = arith.constant dense<0.000000e+00> : vector<8x96xf32>
    %2 = tpu.matmul %0, %1, %cst {dimension_numbers = #tpu.dot_dimension_numbers<[1], [0], [0], [1], [0, 0, 1, 1], [], []>} : vector<8x96xbf16>, vector<96x96xbf16>, vector<8x96xf32> -> vector<8x96xf32>
    %c0_3 = arith.constant 0 : index
    %c0_4 = arith.constant 0 : index
    %3 = vector.load %arg2[%c0_3, %c0_4] : memref<8x8xbf16, #tpu.memory_space<vmem>>, vector<8x8xbf16>
    %4 = arith.truncf %2 : vector<8x96xf32> to vector<8x96xbf16>
    %cst_5 = arith.constant dense<0.000000e+00> : vector<8x96xf32>
    %5 = tpu.matmul %3, %4, %cst_5 {dimension_numbers = #tpu.dot_dimension_numbers<[1], [0], [0], [1], [0, 0, 1, 1], [], []>} : vector<8x8xbf16>, vector<8x96xbf16>, vector<8x96xf32> -> vector<8x96xf32>
    %c0_6 = arith.constant 0 : index
    %c0_7 = arith.constant 0 : index
    %6 = vector.load %arg4[%c0_6, %c0_7] : memref<1x96xf32, #tpu.memory_space<vmem>>, vector<1x96xf32>
    %7 = vector.broadcast %6 : vector<1x96xf32> to vector<8x96xf32>
    %8 = arith.addf %5, %7 : vector<8x96xf32>
    %c0_8 = arith.constant 0 : index
    %c0_9 = arith.constant 0 : index
    %9 = vector.load %arg5[%c0_8, %c0_9] : memref<8x96xf32, #tpu.memory_space<vmem>>, vector<8x96xf32>
    tpu.vector_store %arg5[%c0_8, %c0_9], %8 {strides = array<i32>} : memref<8x96xf32, #tpu.memory_space<vmem>>, vector<8x96xf32>,
    return
  }
  func.func @transform_0(%arg0: i32) -> (i32, i32) {
    %c0_i32 = arith.constant 0 : i32
    %c0_i32_0 = arith.constant 0 : i32
    %c0_i32_1 = arith.constant 0 : i32
    return %c0_i32, %c0_i32_0 : i32, i32
  }
  func.func @transform_1(%arg0: i32) -> (i32, i32) {
    %c0_i32 = arith.constant 0 : i32
    %c0_i32_0 = arith.constant 0 : i32
    %c0_i32_1 = arith.constant 0 : i32
    return %c0_i32, %c0_i32_0 : i32, i32
  }
  func.func @transform_2(%arg0: i32) -> (i32, i32) {
    %c0_i32 = arith.constant 0 : i32
    %c0_i32_0 = arith.constant 0 : i32
    %c0_i32_1 = arith.constant 0 : i32
    return %c0_i32, %c0_i32_0 : i32, i32
  }
  func.func @transform_3(%arg0: i32) -> (i32, i32) {
    %c0_i32 = arith.constant 0 : i32
    %c0_i32_0 = arith.constant 0 : i32
    %c0_i32_1 = arith.constant 0 : i32
    return %c0_i32, %c0_i32_0 : i32, i32
  }
  func.func @transform_4(%arg0: i32) -> (i32, i32) {
    %c0_i32 = arith.constant 0 : i32
    %c0_i32_0 = arith.constant 0 : i32
    %c0_i32_1 = arith.constant 0 : i32
    return %c0_i32, %c0_i32_0 : i32, i32
  }
}

</mosaic_0001>

<llo_original>
// kernel: tpu_custom_call.1
$region0: #{tpu_custom_call.1}
  #allocation0 [shape = 'u32[]', space=smem, size = 0x4, offset = 0x4, fixed_abs, tag = 'smem constant byte address 0x4 - core index']
  #allocation1 [shape = 'u32[144,128]{1,0:T(1,128)}', space=vmem, size = 0x12000, scoped, tag = 'internal scratch']
  %s0 = inlined_call_operand.hbm [shape: bf16[8,96], index: 0, kind: input, shape index: {}]
  %s1 = inlined_call_operand.hbm [shape: bf16[8,8], index: 1, kind: input, shape index: {}]
  %s2 = inlined_call_operand.hbm [shape: bf16[96,96], index: 2, kind: input, shape index: {}]
  %s3 = inlined_call_operand.vmem [shape: f32[1,96], index: 3, kind: input, shape index: {}]
  %s4 = inlined_call_operand.hbm [shape: f32[8,96], index: 4, kind: output, shape index: {}]
  %s5 = sld [smem:[#allocation0]]
  $region38: #{tpu_custom_call.1} parent=0
    _
  %s7 = ssub.s32 1, %s5
  %s8 = scalar_select 0, %s7, %s5
  $region1: #{tpu_custom_call.1} parent=0
    #allocation2 [shape = 'u8[2048]{0}', space=vmem, size = 0x800, scoped, tag = 'input window, operand 0, single buffered']
    #allocation3 [shape = 's32[1]{0}', space=sflag, size = 0x4, scoped, tag = 'scoped memory for tpu_custom_call.1']
    #allocation4 [shape = 's32[1]{0}', space=sflag, size = 0x4, scoped, tag = 'scoped memory for tpu_custom_call.1']
    #allocation5 [shape = 'u8[2048]{0}', space=vmem, size = 0x800, scoped, tag = 'input window, operand 1, single buffered']
    #allocation6 [shape = 's32[1]{0}', space=sflag, size = 0x4, scoped, tag = 'scoped memory for tpu_custom_call.1']
    #allocation7 [shape = 'u8[24576]{0}', space=vmem, size = 0x6000, scoped, tag = 'input window, operand 2, single buffered']
    #allocation8 [shape = 'u8[4096]{0}', space=vmem, size = 0x1000, scoped, tag = 'output window, operand 0, single buffered']
    %9 = vsyncpa [#allocation3], 0
    %10 = vsyncpa [#allocation6], 0
    %11 = vsyncpa [#allocation4], 0
    // Predicated region
    $region2: #{tpu_custom_call.1} parent=1 // pred_check
      _
    $region3: #{tpu_custom_call.1} parent=1 // pred_check_branch
      %13 = sbr.rel (0) target = $region5
    $region4: #{tpu_custom_call.1} parent=1 // pred_region
      %s15 = ssub.s32 64, 64
      %16 = vsyncadd [#allocation3], %s15
      %s18 = sshll.u32 [#allocation2], 4
      %s19 = int_to_ptr.vmem [resolvable:$true] %s18
      %21 = dma.hbm_to_vmem [thread:$0]  %s0, 64, %s19, [#allocation3]
    $region5: #{tpu_custom_call.1} parent=1 // pred_fallthru
      _
    // Predicated region
    $region6: #{tpu_custom_call.1} parent=1 // pred_check
      _
    $region7: #{tpu_custom_call.1} parent=1 // pred_check_branch
      %23 = sbr.rel (0) target = $region9
    $region8: #{tpu_custom_call.1} parent=1 // pred_region
      %s25 = ssub.s32 64, 64
      %26 = vsyncadd [#allocation6], %s25
      %s28 = sshll.u32 [#allocation5], 4
      %s29 = int_to_ptr.vmem [resolvable:$true] %s28
      %31 = dma.hbm_to_vmem [thread:$0]  %s1, 64, %s29, [#allocation6]
    $region9: #{tpu_custom_call.1} parent=1 // pred_fallthru
      _
    // Predicated region
    $region10: #{tpu_custom_call.1} parent=1 // pred_check
      _
    $region11: #{tpu_custom_call.1} parent=1 // pred_check_branch
      %33 = sbr.rel (0) target = $region13
    $region12: #{tpu_custom_call.1} parent=1 // pred_region
      %s35 = ssub.s32 768, 768
      %36 = vsyncadd [#allocation6], %s35
      %s37 = sshll.u32 [#allocation7], 4
      %s38 = int_to_ptr.vmem [resolvable:$true] %s37
      %43 = dma.hbm_to_vmem [thread:$0]  %s2, 768, %s38, [#allocation6], 64, 64, 4
    $region13: #{tpu_custom_call.1} parent=1 // pred_fallthru
      _
    // Predicated region
    $region14: #{tpu_custom_call.1} parent=1 // pred_check
      _
    $region15: #{tpu_custom_call.1} parent=1 // pred_check_branch
      %45 = sbr.rel (0) target = $region17
    $region16: #{tpu_custom_call.1} parent=1 // pred_region
      _
    $region17: #{tpu_custom_call.1} parent=1 // pred_fallthru
      _
    // Predicated region
    $region18: #{tpu_custom_call.1} parent=1 // pred_check
      _
    $region19: #{tpu_custom_call.1} parent=1 // pred_check_branch
      %47 = sbr.rel (0) target = $region21
    $region20: #{tpu_custom_call.1} parent=1 // pred_region
      %48 = dma.done [#allocation3], 64
    $region21: #{tpu_custom_call.1} parent=1 // pred_fallthru
      _
    // Predicated region
    $region22: #{tpu_custom_call.1} parent=1 // pred_check
      _
    $region23: #{tpu_custom_call.1} parent=1 // pred_check_branch
      %50 = sbr.rel (0) target = $region25
    $region24: #{tpu_custom_call.1} parent=1 // pred_region
      %51 = dma.done [#allocation6], 64
    $region25: #{tpu_custom_call.1} parent=1 // pred_fallthru
      _
    // Predicated region
    $region26: #{tpu_custom_call.1} parent=1 // pred_check
      _
    $region27: #{tpu_custom_call.1} parent=1 // pred_check_branch
      %53 = sbr.rel (0) target = $region29
    $region28: #{tpu_custom_call.1} parent=1 // pred_region
      %54 = dma.done [#allocation6], 768
    $region29: #{tpu_custom_call.1} parent=1 // pred_fallthru
      _
    %v56 = vld [vmem:[#allocation2] sm:$0xf]
    %v57 = vld [vmem:[#allocation7] sm:$0xf]
    %v58 = vld [vmem:[#allocation7 + $0x4] sm:$0xf]
    %v59 = vld [vmem:[#allocation7 + $0x8] sm:$0xf]
    %v60 = vld [vmem:[#allocation7 + $0xc] sm:$0xf]
    %v61 = vld [vmem:[#allocation7 + $0x10] sm:$0xf]
    %v62 = vld [vmem:[#allocation7 + $0x14] sm:$0xf]
    %v63 = vld [vmem:[#allocation7 + $0x18] sm:$0xf]
    %v64 = vld [vmem:[#allocation7 + $0x1c] sm:$0xf]
    %v65 = vld [vmem:[#allocation7 + $0x20] sm:$0xf]
    %v66 = vld [vmem:[#allocation7 + $0x24] sm:$0xf]
    %v67 = vld [vmem:[#allocation7 + $0x28] sm:$0xf]
    %v68 = vld [vmem:[#allocation7 + $0x2c] sm:$0xf]
    %v81 = vunpack.c.l.b16 %v57
    %v82 = vunpack.c.l.b16 %v58
    %v83 = vunpack.c.l.b16 %v59
    %v84 = vunpack.c.l.b16 %v60
    %v85 = vunpack.c.l.b16 %v61
    %v86 = vunpack.c.l.b16 %v62
    %v87 = vunpack.c.l.b16 %v63
    %v88 = vunpack.c.l.b16 %v64
    %v89 = vunpack.c.l.b16 %v65
    %v90 = vunpack.c.l.b16 %v66
    %v91 = vunpack.c.l.b16 %v67
    %v92 = vunpack.c.l.b16 %v68
    %v93 = vpack.c.b16 %v82, %v81
    %v94 = vpack.c.b16 %v84, %v83
    %v95 = vpack.c.b16 %v86, %v85
    %v96 = vpack.c.b16 %v88, %v87
    %v97 = vpack.c.b16 %v90, %v89
    %v98 = vpack.c.b16 %v92, %v91
    %vm105 = vcmask 785408
    %v107 = vsel %vm105, %v56, 0
    %109 = vmatprep.subr.bf16.mxu0 0
    %110 = vmatpush1.bf16.msra.mxu0 %v93
    %111 = vmatprep.subr.bf16.mxu0 0
    %112 = vmatpush1.bf16.msra.mxu0 %v94
    %113 = vmatprep.subr.bf16.mxu0 0
    %114 = vmatpush1.bf16.msra.mxu0 %v95
    %115 = vmatprep.subr.bf16.mxu0 0
    %116 = vmatpush1.bf16.msra.mxu0 %v96
    %117 = vmatprep.subr.bf16.mxu0 0
    %118 = vmatpush1.bf16.msra.mxu0 %v97
    %119 = vmatprep.subr.bf16.mxu0 0
    %120 = vmatpush1.bf16.msra.mxu0 %v98
    %121 = vmatprep.subr.bf16.mxu0 0
    %122 = vmatpush1.bf16.msra.mxu0 0
    %123 = vmatprep.subr.bf16.mxu0 0
    %124 = vmatpush1.bf16.msra.mxu0 0
    %125 = vmatprep.subr.bf16.mxu0 0
    %126 = vmatpush1.bf16.msra.mxu0 0
    %127 = vmatprep.subr.bf16.mxu0 0
    %128 = vmatpush1.bf16.msra.mxu0 0
    %129 = vmatprep.subr.bf16.mxu0 0
    %130 = vmatpush1.bf16.msra.mxu0 0
    %131 = vmatprep.subr.bf16.mxu0 0
    %132 = vmatpush1.bf16.msra.mxu0 0
    %133 = vmatprep.subr.bf16.mxu0 0
    %134 = vmatpush1.bf16.msra.mxu0 0
    %135 = vmatprep.subr.bf16.mxu0 0
    %136 = vmatpush1.bf16.msra.mxu0 0
    %137 = vmatprep.subr.bf16.mxu0 0
    %138 = vmatpush1.bf16.msra.mxu0 0
    %139 = vmatprep.subr.bf16.mxu0 0
    %140 = vmatpush1.bf16.msra.mxu0 0
    %141 = vmatprep.mubr.bf16.mxu0 0
    %142 = vmatmul.mubr.bf16.gmra.mrb[0].mxu0 %v107
    %v143 = vpop.f32.mrb[0].mxu0
    %v144 = vadd.f32 0.0, %v143
    %v145 = vpop.f32.mrb[0].mxu0
    %v146 = vpop.f32.mrb[0].mxu0
    %v147 = vpop.f32.mrb[0].mxu0
    %148 = vdwg.mxu0
    %v149 = vld [vmem:[#allocation5] sm:$0xf]
    %v150 = vpack.c.bf16 %v144, %v144
    %v151 = vld [vmem:[%s3] sm:$0x1]
    %v153 = vlaneseq
    %v154 = vshrl.u32 %v153, 7
    %v155 = vsub.s32 0, %v154
    %v156 = vrot.slane %v151, %v155
    %vm158 = vcmask 64512
    %v160 = vsel %vm158, %v149, 0
    %vm162 = vcmask 1043456
    %v164 = vsel %vm162, %v150, 0
    %166 = vmatprep.subr.bf16.mxu0 0
    %167 = vmatpush1.bf16.msra.mxu0 %v164
    %168 = vmatprep.subr.bf16.mxu0 0
    %169 = vmatpush1.bf16.msra.mxu0 0
    %170 = vmatprep.subr.bf16.mxu0 0
    %171 = vmatpush1.bf16.msra.mxu0 0
    %172 = vmatprep.subr.bf16.mxu0 0
    %173 = vmatpush1.bf16.msra.mxu0 0
    %174 = vmatprep.subr.bf16.mxu0 0
    %175 = vmatpush1.bf16.msra.mxu0 0
    %176 = vmatprep.subr.bf16.mxu0 0
    %177 = vmatpush1.bf16.msra.mxu0 0
    %178 = vmatprep.subr.bf16.mxu0 0
    %179 = vmatpush1.bf16.msra.mxu0 0
    %180 = vmatprep.subr.bf16.mxu0 0
    %181 = vmatpush1.bf16.msra.mxu0 0
    %182 = vmatprep.subr.bf16.mxu0 0
    %183 = vmatpush1.bf16.msra.mxu0 0
    %184 = vmatprep.subr.bf16.mxu0 0
    %185 = vmatpush1.bf16.msra.mxu0 0
    %186 = vmatprep.subr.bf16.mxu0 0
    %187 = vmatpush1.bf16.msra.mxu0 0
    %188 = vmatprep.subr.bf16.mxu0 0
    %189 = vmatpush1.bf16.msra.mxu0 0
    %190 = vmatprep.subr.bf16.mxu0 0
    %191 = vmatpush1.bf16.msra.mxu0 0
    %192 = vmatprep.subr.bf16.mxu0 0
    %193 = vmatpush1.bf16.msra.mxu0 0
    %194 = vmatprep.subr.bf16.mxu0 0
    %195 = vmatpush1.bf16.msra.mxu0 0
    %196 = vmatprep.subr.bf16.mxu0 0
    %197 = vmatpush1.bf16.msra.mxu0 0
    %198 = vmatprep.mubr.bf16.mxu0 0
    %199 = vmatmul.mubr.bf16.gmra.mrb[0].mxu0 %v160
    %v200 = vpop.f32.mrb[0].mxu0
    %v201 = vadd.f32 %v156, %v200
    %v202 = vpop.f32.mrb[0].mxu0
    %v203 = vpop.f32.mrb[0].mxu0
    %v204 = vpop.f32.mrb[0].mxu0
    %205 = vdwg.mxu0
    %206 = vst.msk [vmem:[#allocation8] sm:$0xff] %vm105, %v201
    // Predicated region
    $region30: #{tpu_custom_call.1} parent=1 // pred_check
      _
    $region31: #{tpu_custom_call.1} parent=1 // pred_check_branch
      %208 = sbr.rel (0) target = $region33
    $region32: #{tpu_custom_call.1} parent=1 // pred_region
      %s210 = ssub.s32 128, 128
      %211 = vsyncadd [#allocation4], %s210
      %s213 = sshll.u32 [#allocation8], 4
      %s214 = int_to_ptr.vmem [resolvable:$true] %s213
      %216 = dma.vmem_to_hbm [thread:$0]  %s214, 128, %s4, [#allocation4]
    $region33: #{tpu_custom_call.1} parent=1 // pred_fallthru
      _
    // Predicated region
    $region34: #{tpu_custom_call.1} parent=1 // pred_check
      _
    $region35: #{tpu_custom_call.1} parent=1 // pred_check_branch
      %218 = sbr.rel (0) target = $region37
    $region36: #{tpu_custom_call.1} parent=1 // pred_region
      %219 = dma.done [#allocation4], 128
    $region37: #{tpu_custom_call.1} parent=1 // pred_fallthru
      _
    %220 = vsyncpa [#allocation3], 1
    %221 = vsyncpa [#allocation6], 1
    %222 = vsyncpa [#allocation4], 1

</llo_original>
